<compile_context>
chip_gen: v6e
topology: v6e:2x2x1
jax: 0.10.0
libtpu: 0.0.40
codegen_flags: <defaults>
</compile_context>

<pallas_src>
import jax
import jax.numpy as jnp
from jax.experimental import pallas as pl
from jax.experimental.pallas import tpu as pltpu

_LANES = 128
_SUBLANES = 8


def _soft_dice_kernel(x_ref, t_ref, out_ref):
    """Accumulate lane-partial sums for one (batch, D-split) output block.

    x_ref, t_ref : (TR, 128) VMEM tiles (TR is a multiple of 8)
    out_ref      : (1, 1, 3, 128) VMEM accumulator block, resident across the
                   innermost ("arbitrary") grid axis.
                   rows: [0]=sum(probs*tgt), [1]=sum(probs), [2]=sum(tgt)
    """
    j = pl.program_id(2)

    @pl.when(j == 0)
    def _init():
        out_ref[...] = jnp.zeros_like(out_ref)

    x = x_ref[...].astype(jnp.float32)
    t = t_ref[...].astype(jnp.float32)
    p = jax.nn.sigmoid(x)

    inter_s = jnp.sum(p * t, axis=0, keepdims=True)   # (1, 128)
    p_s = jnp.sum(p, axis=0, keepdims=True)           # (1, 128)
    t_s = jnp.sum(t, axis=0, keepdims=True)           # (1, 128)
    partial = jnp.concatenate([inter_s, p_s, t_s], axis=0)   # (3, 128)
    out_ref[...] += partial[None, None]                       # (1, 1, 3, 128)


def _choose_block_rows(r, max_rows):
    """Pick (rows_per_block, padded_rows_per_batch).

    rows_per_block is a multiple of 8 and divides padded_rows_per_batch.
    Prefers zero extra padding; if the exact-divisor search only yields tiny
    blocks (bad factorization of r), pads r up by at most r/8 rows so blocks
    stay large and the grid loop stays short.
    """
    max_rows = max(_SUBLANES, max_rows - max_rows % _SUBLANES)
    if r <= max_rows:
        return r, r                                   # whole batch row = 1 block
    # Largest multiple of 8 that divides r exactly and fits the block budget.
    best = _SUBLANES
    cand = max_rows
    while cand >= _SUBLANES:
        if r % cand == 0:
            best = cand
            break
        cand -= _SUBLANES
    if best * 8 >= max_rows:                          # within 8x of target: fine
        return best, r
    # Poor factorization: pad rows per batch (waste capped at 12.5%).
    tr = max_rows
    while tr > best:
        r_pad = ((r + tr - 1) // tr) * tr
        if (r_pad - r) * 8 <= r:
            return tr, r_pad
        tr = max(_SUBLANES, tr // 2)
        tr -= tr % _SUBLANES
    return best, r


def soft_dice_loss(logits, targets, *, target_block_bytes=2 * 1024 * 1024):
    """logits, targets: (N, C, H, W) arrays (NCHW). Returns scalar f32 loss."""
    n = logits.shape[0]
    x2 = logits.reshape(n, -1)
    t2 = targets.reshape(n, -1)
    d = x2.shape[1]

    # Rows per batch after folding the feature dim onto 128 lanes, rounded up
    # to a multiple of 8 sublanes so every vreg tile is dense.
    r0 = -(-d // _LANES)
    r = ((r0 + _SUBLANES - 1) // _SUBLANES) * _SUBLANES
    max_rows = max(_SUBLANES, target_block_bytes // (_LANES * 4))
    tr, r_pad = _choose_block_rows(r, max_rows)
    d_pad = r_pad * _LANES

    # Padding is exact: sigmoid(-1e9) == 0 and target pad == 0, so padded
    # elements contribute nothing to any of the three sums.
    if d_pad != d:
        x2 = jnp.pad(x2, ((0, 0), (0, d_pad - d)), constant_values=-1e9)
        t2 = jnp.pad(t2, ((0, 0), (0, d_pad - d)), constant_values=0)

    x_rows = x2.reshape(n * r_pad, _LANES)   # row-major: no copy when no pad
    t_rows = t2.reshape(n * r_pad, _LANES)

    c = r_pad // tr                           # row-blocks per batch
    s = 2 if (c >= 2 and c % 2 == 0) else 1   # parallel D-splits (v7x megacore)
    cj = c // s
    grid = (n, s, cj)

    def in_map(i, sp, j):
        return (i * c + sp * cj + j, 0)

    in_spec_x = pl.BlockSpec((tr, _LANES), in_map)
    in_spec_t = pl.BlockSpec((tr, _LANES), in_map)
    out_spec = pl.BlockSpec((1, 1, 3, _LANES), lambda i, sp, j: (i, sp, 0, 0))

    # Explicit VMEM budget: 2 inputs x 2 pipeline buffers of one block each,
    # plus the small output block + headroom; safe on v5e/v6e/v7x.
    itemsize = max(x_rows.dtype.itemsize, t_rows.dtype.itemsize, 4)
    in_block_bytes = tr * _LANES * itemsize
    out_block_bytes = 3 * _LANES * 4
    vmem_limit = int(max(2 * 2 * in_block_bytes + 2 * out_block_bytes + (4 << 20),
                         16 << 20))

    partials = pl.pallas_call(
        _soft_dice_kernel,
        out_shape=jax.ShapeDtypeStruct((n, s, 3, _LANES), jnp.float32),
        grid_spec=pltpu.PrefetchScalarGridSpec(
            num_scalar_prefetch=0,
            grid=grid,
            in_specs=[in_spec_x, in_spec_t],
            out_specs=out_spec,
        ),
        compiler_params=pltpu.CompilerParams(
            dimension_semantics=("parallel", "parallel", "arbitrary"),
            vmem_limit_bytes=vmem_limit),
    )(x_rows, t_rows)

    # Cheap finalize in the wrapper (lane reduce, per-batch dice, 1 - mean).
    sums = partials.sum(axis=(1, 3))          # (N, 3)
    inter = sums[:, 0]
    p_sum = sums[:, 1]
    t_sum = sums[:, 2]
    smooth = 1.0
    score = 2.0 * (inter + smooth) / (p_sum + t_sum + smooth)
    return 1.0 - jnp.sum(score) / n


def soft_dice_loss_ref(logits, targets):
    """Pure-JAX reference matching the PyTorch module exactly."""
    n = targets.shape[0]
    smooth = 1.0
    probs = jax.nn.sigmoid(logits)
    m1 = probs.reshape(n, -1)
    m2 = targets.reshape(n, -1)
    intersection = m1 * m2
    score = 2.0 * (intersection.sum(1) + smooth) / (
        m1.sum(1) + m2.sum(1) + smooth)
    return 1.0 - score.sum() / n


if __name__ == "__main__":
    key = jax.random.PRNGKey(0)
    k1, k2 = jax.random.split(key)

    # NCHW, small shapes: batch=2, channels=4, spatial=16
    N, C, H, W = 2, 4, 16, 16
    logits = jax.random.normal(k1, (N, C, H, W), dtype=jnp.float32)
    targets = (jax.random.uniform(k2, (N, C, H, W)) > 0.5).astype(jnp.float32)

    loss = soft_dice_loss(logits, targets)
    loss = jax.block_until_ready(loss)

    ref = soft_dice_loss_ref(logits, targets)
    assert jnp.allclose(loss, ref, atol=1e-5, rtol=1e-5), (loss, ref)

    print("KERNEL_OK")
</pallas_src>

<mosaic_0001>
module attributes {stable_mosaic.version = 11 : i64} {
  func.func @_soft_dice_kernel(%arg0: i32, %arg1: i32, %arg2: i32, %arg3: memref<8x128xf32, #tpu.memory_space<vmem>>, %arg4: memref<8x128xf32, #tpu.memory_space<vmem>>, %arg5: memref<1x1x3x128xf32, #tpu.memory_space<vmem>>) attributes {dimension_semantics = [#tpu.dimension_semantics<parallel>, #tpu.dimension_semantics<parallel>, #tpu.dimension_semantics<arbitrary>], iteration_bounds = array<i64: 2, 1, 1>, scalar_prefetch = 0 : i64, scratch_operands = 0 : i64, tpu.core_type = #tpu.core_type<tc>, window_params = [{transform_indices = @transform_0, window_bounds = array<i64: 8, 128>}, {transform_indices = @transform_1, window_bounds = array<i64: 8, 128>}, {transform_indices = @transform_2, window_bounds = array<i64: 1, 1, 3, 128>}]} {
    %c0_i32 = arith.constant 0 : i32
    %0 = arith.cmpi eq, %arg2, %c0_i32 : i32
    %1 = arith.extui %0 : i1 to i32
    %c0_i32_0 = arith.constant 0 : i32
    %2 = arith.cmpi ne, %1, %c0_i32_0 : i32
    scf.if %2 {
      %cst_15 = arith.constant 0.000000e+00 : f32
      %22 = vector.broadcast %cst_15 : f32 to vector<1x1x3x128xf32>
      %c0_16 = arith.constant 0 : index
      %c0_17 = arith.constant 0 : index
      %c0_18 = arith.constant 0 : index
      %c0_19 = arith.constant 0 : index
      %23 = vector.load %arg5[%c0_16, %c0_17, %c0_18, %c0_19] : memref<1x1x3x128xf32, #tpu.memory_space<vmem>>, vector<1x1x3x128xf32>
      tpu.vector_store %arg5[%c0_16, %c0_17, %c0_18, %c0_19], %22 {strides = array<i32>} : memref<1x1x3x128xf32, #tpu.memory_space<vmem>>, vector<1x1x3x128xf32>,
    } else {
    }
    %c0 = arith.constant 0 : index
    %c0_1 = arith.constant 0 : index
    %3 = vector.load %arg3[%c0, %c0_1] : memref<8x128xf32, #tpu.memory_space<vmem>>, vector<8x128xf32>
    %c0_2 = arith.constant 0 : index
    %c0_3 = arith.constant 0 : index
    %4 = vector.load %arg4[%c0_2, %c0_3] : memref<8x128xf32, #tpu.memory_space<vmem>>, vector<8x128xf32>
    %5 = arith.negf %3 : vector<8x128xf32>
    %6 = math.exp %5 : vector<8x128xf32>
    %cst = arith.constant 1.000000e+00 : f32
    %7 = vector.broadcast %cst : f32 to vector<8x128xf32>
    %8 = arith.addf %7, %6 : vector<8x128xf32>
    %9 = arith.divf %7, %8 : vector<8x128xf32>
    %10 = arith.mulf %9, %4 : vector<8x128xf32>
    %cst_4 = arith.constant dense<0.000000e+00> : vector<128xf32>
    %11 = vector.multi_reduction <add>, %10, %cst_4 [0] : vector<8x128xf32> to vector<128xf32>
    %12 = vector.shape_cast %11 : vector<128xf32> to vector<1x128xf32>
    %cst_5 = arith.constant dense<0.000000e+00> : vector<128xf32>
    %13 = vector.multi_reduction <add>, %9, %cst_5 [0] : vector<8x128xf32> to vector<128xf32>
    %14 = vector.shape_cast %13 : vector<128xf32> to vector<1x128xf32>
    %cst_6 = arith.constant dense<0.000000e+00> : vector<128xf32>
    %15 = vector.multi_reduction <add>, %4, %cst_6 [0] : vector<8x128xf32> to vector<128xf32>
    %16 = vector.shape_cast %15 : vector<128xf32> to vector<1x128xf32>
    %17 = tpu.concatenate %12, %14, %16 in 0 : vector<1x128xf32>, vector<1x128xf32>, vector<1x128xf32> -> vector<3x128xf32>
    %c0_7 = arith.constant 0 : index
    %c0_8 = arith.constant 0 : index
    %c0_9 = arith.constant 0 : index
    %c0_10 = arith.constant 0 : index
    %18 = vector.load %arg5[%c0_7, %c0_8, %c0_9, %c0_10] : memref<1x1x3x128xf32, #tpu.memory_space<vmem>>, vector<1x1x3x128xf32>
    %19 = vector.shape_cast %17 : vector<3x128xf32> to vector<1x1x3x128xf32>
    %20 = arith.addf %18, %19 : vector<1x1x3x128xf32>
    %c0_11 = arith.constant 0 : index
    %c0_12 = arith.constant 0 : index
    %c0_13 = arith.constant 0 : index
    %c0_14 = arith.constant 0 : index
    %21 = vector.load %arg5[%c0_11, %c0_12, %c0_13, %c0_14] : memref<1x1x3x128xf32, #tpu.memory_space<vmem>>, vector<1x1x3x128xf32>
    tpu.vector_store %arg5[%c0_11, %c0_12, %c0_13, %c0_14], %20 {strides = array<i32>} : memref<1x1x3x128xf32, #tpu.memory_space<vmem>>, vector<1x1x3x128xf32>,
    return
  }
  func.func @transform_0(%arg0: i32, %arg1: i32, %arg2: i32) -> (i32, i32) {
    %c1_i32 = arith.constant 1 : i32
    %0 = arith.muli %arg0, %c1_i32 : i32
    %c1_i32_0 = arith.constant 1 : i32
    %1 = arith.muli %arg1, %c1_i32_0 : i32
    %2 = arith.addi %0, %1 : i32
    %3 = arith.addi %2, %arg2 : i32
    %c0_i32 = arith.constant 0 : i32
    %c0_i32_1 = arith.constant 0 : i32
    return %3, %c0_i32 : i32, i32
  }
  func.func @transform_1(%arg0: i32, %arg1: i32, %arg2: i32) -> (i32, i32) {
    %c1_i32 = arith.constant 1 : i32
    %0 = arith.muli %arg0, %c1_i32 : i32
    %c1_i32_0 = arith.constant 1 : i32
    %1 = arith.muli %arg1, %c1_i32_0 : i32
    %2 = arith.addi %0, %1 : i32
    %3 = arith.addi %2, %arg2 : i32
    %c0_i32 = arith.constant 0 : i32
    %c0_i32_1 = arith.constant 0 : i32
    return %3, %c0_i32 : i32, i32
  }
  func.func @transform_2(%arg0: i32, %arg1: i32, %arg2: i32) -> (i32, i32, i32, i32) {
    %c0_i32 = arith.constant 0 : i32
    %c0_i32_0 = arith.constant 0 : i32
    %c0_i32_1 = arith.constant 0 : i32
    return %arg0, %arg1, %c0_i32, %c0_i32_0 : i32, i32, i32, i32
  }
}

</mosaic_0001>

<llo_original>
// kernel: tpu_custom_call.1
$region0: #{tpu_custom_call.1}
  #allocation0 [shape = 'u32[]', space=smem, size = 0x4, offset = 0x4, fixed_abs, tag = 'smem constant byte address 0x4 - core index']
  #allocation1 [shape = 'u32[144,128]{1,0:T(1,128)}', space=vmem, size = 0x12000, scoped, tag = 'internal scratch']
  %s0 = inlined_call_operand.hbm [shape: f32[16,128], index: 0, kind: input, shape index: {}]
  %s1 = inlined_call_operand.hbm [shape: f32[16,128], index: 1, kind: input, shape index: {}]
  %s2 = inlined_call_operand.vmem [shape: f32[2,1,3,128], index: 2, kind: output, shape index: {}]
  %s3 = sld [smem:[#allocation0]]
  $region53: #{tpu_custom_call.1} parent=0
    _
  %s5 = ssub.s32 1, %s3
  %s6 = scalar_select 0, %s5, %s3
  $region1: #{tpu_custom_call.1} parent=0
    #allocation2 [shape = 'u8[8192]{0}', space=vmem, size = 0x2000, scoped, tag = 'input window, operand 0']
    #allocation3 [shape = 's32[2]{0}', space=sflag, size = 0x8, scoped, tag = 'scoped memory for tpu_custom_call.1']
    #allocation4 [shape = 'u8[8192]{0}', space=vmem, size = 0x2000, scoped, tag = 'input window, operand 1']
    #allocation5 [shape = 's32[2]{0}', space=sflag, size = 0x8, scoped, tag = 'scoped memory for tpu_custom_call.1']
    %7 = vsyncpa [#allocation3], 0
    %s8 = scalar_lea.sflag [#allocation3], 1
    %9 = vsyncpa %s8, 0
    %10 = vsyncpa [#allocation5], 0
    %s11 = scalar_lea.sflag [#allocation5], 1
    %12 = vsyncpa %s11, 0
    loop: start=0, step=1, limit=4
    $region2: #{tpu_custom_call.1} parent=1 // loop_pre_header
      _
    $region3: #{tpu_custom_call.1} parent=1 // loop_header
      %s14 = sphi 0, %s18
      %p15 = scmp.ge.s32.totalorder %s14, 4
      %s21 = sphi 0, %s40
      %s22 = sphi 0, %s36
      %s23 = sphi 0, %s32
      %s24 = sphi 0, %s21
      %s25 = sphi 0, %s22
      %s26 = sphi 0, %s23
      %s27 = sphi 0, %s24
      %s28 = sphi 0, %s25
      %s29 = sphi 0, %s26
      %s47 = sphi 0, %s49
      %s50 = sphi 0, %s47
      %s51 = sphi 0, %s50
      %s67 = sphi 0, %s51
      %s77 = sphi 0, %s79
      %s80 = sphi 0, %s77
      %s81 = sphi 0, %s80
      %s97 = sphi 0, %s81
      %s105 = sphi 0, %s107
      %s108 = sphi 0, %s105
      %s109 = sphi 0, %s108
      %s125 = sphi 0, %s109
    $region4: #{tpu_custom_call.1} parent=1 // loop_header_branch
      %17 = sbr.rel (%p15) target = $region8
    $region5: #{tpu_custom_call.1} parent=1 // loop_body
      %s19 = ssub.s32 %s14, 1
      %s20 = ssub.s32 %s14, 2
      %s30 = sadd.s32 1, %s23
      %p31 = scmp.ge.s32.totalorder %s30, 1
      %s32 = scalar_select %p31, 0, %s30
      %s33 = sadd.s32 1, %s22
      %s34 = scalar_select %p31, %s33, %s22
      %p35 = scmp.ge.s32.totalorder %s34, 1
      %s36 = scalar_select %p35, 0, %s34
      %s37 = sadd.s32 1, %s21
      %s38 = scalar_select %p35, %s37, %s21
      %p39 = scmp.ge.s32.totalorder %s38, 2
      %s40 = scalar_select %p39, 0, %s38
      %s41 = sadd.s32 %s21, %s22
      %s42 = sadd.s32 %s41, %s23
      %s43 = sadd.s32 %s40, %s36
      %s44 = sadd.s32 %s43, %s32
      %s45 = ssub.s32 %s42, %s44
      %p46 = scmp.eq.s32.totalorder %s45, 0
      %s48 = sadd.s32 %s47, 1
      %s49 = scalar_select %p46, %s47, %s48
      %p52 = pneg %p46
      %p53 = scmp.eq.s32.totalorder %s14, 1
      %p54 = por %p52, %p53
      %p55 = scmp.ne.s32.totalorder %s47, %s50
      %p56 = scmp.eq.s32.totalorder %s14, 0
      %p57 = por %p55, %p56
      %p58 = scmp.ne.s32.totalorder %s47, %s50
      %p59 = scmp.eq.s32.totalorder %s19, 1
      %p60 = por %p58, %p59
      %p61 = scmp.ne.s32.totalorder %s50, %s51
      %p62 = scmp.eq.s32.totalorder %s19, 0
      %p63 = por %p61, %p62
      %p64 = scmp.ne.s32.totalorder %s50, %s51
      %p65 = scmp.eq.s32.totalorder %s20, 1
      %p66 = por %p64, %p65
      %p68 = scmp.ne.s32.totalorder %s51, %s67
      %p69 = scmp.eq.s32.totalorder %s20, 0
      %p70 = por %p68, %p69
      %s71 = sadd.s32 %s21, %s22
      %s72 = sadd.s32 %s71, %s23
      %s73 = sadd.s32 %s40, %s36
      %s74 = sadd.s32 %s73, %s32
      %s75 = ssub.s32 %s72, %s74
      %p76 = scmp.eq.s32.totalorder %s75, 0
      %s78 = sadd.s32 %s77, 1
      %s79 = scalar_select %p76, %s77, %s78
      %p82 = pneg %p76
      %p83 = scmp.eq.s32.totalorder %s14, 1
      %p84 = por %p82, %p83
      %p85 = scmp.ne.s32.totalorder %s77, %s80
      %p86 = scmp.eq.s32.totalorder %s14, 0
      %p87 = por %p85, %p86
      %p88 = scmp.ne.s32.totalorder %s77, %s80
      %p89 = scmp.eq.s32.totalorder %s19, 1
      %p90 = por %p88, %p89
      %p91 = scmp.ne.s32.totalorder %s80, %s81
      %p92 = scmp.eq.s32.totalorder %s19, 0
      %p93 = por %p91, %p92
      %p94 = scmp.ne.s32.totalorder %s80, %s81
      %p95 = scmp.eq.s32.totalorder %s20, 1
      %p96 = por %p94, %p95
      %p98 = scmp.ne.s32.totalorder %s81, %s97
      %p99 = scmp.eq.s32.totalorder %s20, 0
      %p100 = por %p98, %p99
      %s101 = ssub.s32 %s21, %s40
      %s102 = ssub.s32 %s22, %s36
      %s103 = sor.u32 %s101, %s102
      %p104 = scmp.eq.s32.totalorder %s103, 0
      %s106 = sadd.s32 %s105, 1
      %s107 = scalar_select %p104, %s105, %s106
      %p110 = pneg %p104
      %p111 = scmp.eq.s32.totalorder %s14, 1
      %p112 = por %p110, %p111
      %p113 = scmp.ne.s32.totalorder %s105, %s108
      %p114 = scmp.eq.s32.totalorder %s14, 0
      %p115 = por %p113, %p114
      %p116 = scmp.ne.s32.totalorder %s105, %s108
      %p117 = scmp.eq.s32.totalorder %s19, 1
      %p118 = por %p116, %p117
      %p119 = scmp.ne.s32.totalorder %s108, %s109
      %p120 = scmp.eq.s32.totalorder %s19, 0
      %p121 = por %p119, %p120
      %p122 = scmp.ne.s32.totalorder %s108, %s109
      %p123 = scmp.eq.s32.totalorder %s20, 1
      %p124 = por %p122, %p123
      %p126 = scmp.ne.s32.totalorder %s109, %s125
      %p127 = scmp.eq.s32.totalorder %s20, 0
      %p128 = por %p126, %p127
      %p129 = scmp.le.s32.totalorder 1, %s14
      %p130 = scmp.lt.s32.totalorder %s14, 3
      %p131 = pnand %p129, %p130
      %p132 = pneg %p131
      // Predicated region
      $region9: #{tpu_custom_call.1} parent=5 // pred_check
        _
      $region10: #{tpu_custom_call.1} parent=5 // pred_check_branch
        %134 = sbr.rel (%p131) target = $region12
      $region11: #{tpu_custom_call.1} parent=5 // pred_region
        %s135 = ssub.s32 %s14, 1
      $region12: #{tpu_custom_call.1} parent=5 // pred_fallthru
        _
      %p136 = scmp.lt.s32.totalorder %s14, 2
      // Predicated region
      $region13: #{tpu_custom_call.1} parent=5 // pred_check
        %p137 = pneg %p136
      $region14: #{tpu_custom_call.1} parent=5 // pred_check_branch
        %139 = sbr.rel (%p137) target = $region16
      $region15: #{tpu_custom_call.1} parent=5 // pred_region
        // Predicated region
        $region17: #{tpu_custom_call.1} parent=15 // pred_check
          %p140 = pneg %p57
        $region18: #{tpu_custom_call.1} parent=15 // pred_check_branch
          %142 = sbr.rel (%p140) target = $region20
        $region19: #{tpu_custom_call.1} parent=15 // pred_region
          %s143 = sand.u32 %s47, 1
          %s144 = scalar_lea.sflag [#allocation3], %s143
          %s145 = sand.u32 %s47, 1
          %s146 = smul.addr %s145, 8
          %s147 = scalar_lea.vmem [#allocation2], %s146
          %s148 = sadd.s32 %s21, %s22
          %s149 = sadd.s32 %s148, %s23
          %s151 = ssub.s32 128, 128
          %152 = vsyncadd %s144, %s151
          %s153 = smul.addr %s149, 128
          %s154 = scalar_lea.hbm %s0, %s153
          %s156 = sshll.u32 %s147, 4
          %s157 = int_to_ptr.vmem [resolvable:$true] %s156
          %159 = dma.hbm_to_vmem [thread:$0]  %s154, 128, %s157, %s144
        $region20: #{tpu_custom_call.1} parent=15 // pred_fallthru
          _
        // Predicated region
        $region21: #{tpu_custom_call.1} parent=15 // pred_check
          %p160 = pneg %p87
        $region22: #{tpu_custom_call.1} parent=15 // pred_check_branch
          %162 = sbr.rel (%p160) target = $region24
        $region23: #{tpu_custom_call.1} parent=15 // pred_region
          %s163 = sand.u32 %s77, 1
          %s164 = scalar_lea.sflag [#allocation5], %s163
          %s165 = sand.u32 %s77, 1
          %s166 = smul.addr %s165, 8
          %s167 = scalar_lea.vmem [#allocation4], %s166
          %s168 = sadd.s32 %s21, %s22
          %s169 = sadd.s32 %s168, %s23
          %s171 = ssub.s32 128, 128
          %172 = vsyncadd %s164, %s171
          %s173 = smul.addr %s169, 128
          %s174 = scalar_lea.hbm %s1, %s173
          %s176 = sshll.u32 %s167, 4
          %s177 = int_to_ptr.vmem [resolvable:$true] %s176
          %179 = dma.hbm_to_vmem [thread:$0]  %s174, 128, %s177, %s164
        $region24: #{tpu_custom_call.1} parent=15 // pred_fallthru
          _
      $region16: #{tpu_custom_call.1} parent=5 // pred_fallthru
        _
      %p180 = scmp.le.s32.totalorder 1, %s14
      %p181 = scmp.lt.s32.totalorder %s14, 3
      %p182 = pnand %p180, %p181
      %p183 = pneg %p182
      // Predicated region
      $region25: #{tpu_custom_call.1} parent=5 // pred_check
        _
      $region26: #{tpu_custom_call.1} parent=5 // pred_check_branch
        %185 = sbr.rel (%p182) target = $region28
      $region27: #{tpu_custom_call.1} parent=5 // pred_region
        %s186 = ssub.s32 %s14, 1
        %s187 = sand.u32 %s50, 1
        %s188 = scalar_lea.sflag [#allocation3], %s187
        %s189 = sand.u32 %s50, 1
        %s190 = smul.addr %s189, 8
        %s191 = scalar_lea.vmem [#allocation2], %s190
        // Predicated region
        $region29: #{tpu_custom_call.1} parent=27 // pred_check
          %p192 = pneg %p63
        $region30: #{tpu_custom_call.1} parent=27 // pred_check_branch
          %194 = sbr.rel (%p192) target = $region32
        $region31: #{tpu_custom_call.1} parent=27 // pred_region
          %195 = dma.done %s188, 128
        $region32: #{tpu_custom_call.1} parent=27 // pred_fallthru
          _
        %s196 = sand.u32 %s80, 1
        %s197 = scalar_lea.sflag [#allocation5], %s196
        %s198 = sand.u32 %s80, 1
        %s199 = smul.addr %s198, 8
        %s200 = scalar_lea.vmem [#allocation4], %s199
        // Predicated region
        $region33: #{tpu_custom_call.1} parent=27 // pred_check
          %p201 = pneg %p93
        $region34: #{tpu_custom_call.1} parent=27 // pred_check_branch
          %203 = sbr.rel (%p201) target = $region36
        $region35: #{tpu_custom_call.1} parent=27 // pred_region
          %204 = dma.done %s197, 128
        $region36: #{tpu_custom_call.1} parent=27 // pred_fallthru
          _
        %s205 = sand.u32 %s50, 1
        %s206 = scalar_lea.sflag [#allocation3], %s205
        %s207 = sand.u32 %s50, 1
        %s208 = smul.addr %s207, 8
        %s209 = scalar_lea.vmem [#allocation2], %s208
        %p210 = pneg %p63
        %p211 = pneg %p60
        %s212 = sand.u32 %s80, 1
        %s213 = scalar_lea.sflag [#allocation5], %s212
        %s214 = sand.u32 %s80, 1
        %s215 = smul.addr %s214, 8
        %s216 = scalar_lea.vmem [#allocation4], %s215
        %p217 = pneg %p93
        %p218 = pneg %p90
        %p219 = pneg %p121
        %p220 = pneg %p118
        %p221 = scmp.lt.s32.totalorder %s24, 1
        %s222 = scalar_select %p221, %s24, 1
        %p223 = scmp.lt.s32.totalorder %s25, 0
        %s224 = scalar_select %p223, %s25, 0
        %s225 = sadd.s32 %s224, %s222
        %s226 = smul.addr %s225, 4
        %s227 = scalar_lea.vmem %s2, %s226
        %s228 = sadd.s32 %s24, %s25
        %s229 = sadd.s32 %s228, %s26
        %s230 = sadd.s32 %s24, %s25
        %s231 = sadd.s32 %s230, %s26
        %p232 = scmp.lt.s32.totalorder %s24, 1
        %s233 = scalar_select %p232, %s24, 1
        %p234 = scmp.lt.s32.totalorder %s25, 0
        %s235 = scalar_select %p234, %s25, 0
        %s236 = sadd.s32 %s235, %s233
        %s237 = smul.addr %s236, 4
        %s238 = scalar_lea.vmem %s2, %s237
        %p239 = scmp.eq.s32.totalorder %s26, 0
        // Predicated region
        $region37: #{tpu_custom_call.1} parent=27 // pred_check
          %p240 = pneg %p239
        $region38: #{tpu_custom_call.1} parent=27 // pred_check_branch
          %242 = sbr.rel (%p240) target = $region40
        $region39: #{tpu_custom_call.1} parent=27 // pred_region
          %243 = vst [vmem:[%s238] sm:$0x7] 0.0
        $region40: #{tpu_custom_call.1} parent=27 // pred_fallthru
          _
        %v244 = vld [vmem:[%s191] sm:$0xff]
        %v245 = vld [vmem:[%s200] sm:$0xff]
        %v246 = vxor.u32 %v244, 2147483648
        %v247 = vmul.f32 %v246, 1.442695
        %v248 = vpow.pop %v247
        %v249 = vadd.f32 %v248, 1.0
        %v250 = vrcp.pop %v249
        %v251 = vmul.f32 1.0, %v250
        %v252 = vmul.f32 %v251, %v245
        %v253 = vrot.slane %v252, 4
        %v254 = vadd.f32 %v252, %v253
        %v255 = vrot.slane %v254, 2
        %v256 = vadd.f32 %v254, %v255
        %v257 = vrot.slane %v256, 1
        %v258 = vadd.f32 %v256, %v257
        %v259 = vrot.slane %v251, 4
        %v260 = vadd.f32 %v251, %v259
        %v261 = vrot.slane %v260, 2
        %v262 = vadd.f32 %v260, %v261
        %v263 = vrot.slane %v262, 1
        %v264 = vadd.f32 %v262, %v263
        %v265 = vrot.slane %v245, 4
        %v266 = vadd.f32 %v245, %v265
        %v267 = vrot.slane %v266, 2
        %v268 = vadd.f32 %v266, %v267
        %v269 = vrot.slane %v268, 1
        %v270 = vadd.f32 %v268, %v269
        %vm271 = vcmask 1040384
        %v272 = vsel %vm271, %v258, %v264
        %vm273 = vcmask 1041408
        %v274 = vsel %vm273, %v272, %v270
        %v275 = vld [vmem:[%s238] sm:$0x7]
        %v276 = vadd.f32 %v275, %v274
        %277 = vst [vmem:[%s238] sm:$0x7] %v276
        %p278 = scmp.lt.s32.totalorder %s24, 1
        %s279 = scalar_select %p278, %s24, 1
        %p280 = scmp.lt.s32.totalorder %s25, 0
        %s281 = scalar_select %p280, %s25, 0
        %s282 = sadd.s32 %s281, %s279
        %s283 = smul.addr %s282, 4
        %s284 = scalar_lea.vmem %s2, %s283
        // Predicated region
        $region41: #{tpu_custom_call.1} parent=27 // pred_check
          %p285 = pneg %p118
        $region42: #{tpu_custom_call.1} parent=27 // pred_check_branch
          %287 = sbr.rel (%p285) target = $region44
        $region43: #{tpu_custom_call.1} parent=27 // pred_region
          _
        $region44: #{tpu_custom_call.1} parent=27 // pred_fallthru
          _
      $region28: #{tpu_custom_call.1} parent=5 // pred_fallthru
        _
      %p288 = scmp.le.s32.totalorder 2, %s14
      // Predicated region
      $region45: #{tpu_custom_call.1} parent=5 // pred_check
        %p289 = pneg %p288
      $region46: #{tpu_custom_call.1} parent=5 // pred_check_branch
        %291 = sbr.rel (%p289) target = $region48
      $region47: #{tpu_custom_call.1} parent=5 // pred_region
        %s292 = ssub.s32 %s14, 2
        // Predicated region
        $region49: #{tpu_custom_call.1} parent=47 // pred_check
          %p293 = pneg %p124
        $region50: #{tpu_custom_call.1} parent=47 // pred_check_branch
          %295 = sbr.rel (%p293) target = $region52
        $region51: #{tpu_custom_call.1} parent=47 // pred_region
          %p296 = scmp.lt.s32.totalorder %s27, 1
          %s297 = scalar_select %p296, %s27, 1
          %p298 = scmp.lt.s32.totalorder %s28, 0
          %s299 = scalar_select %p298, %s28, 0
          %s300 = sadd.s32 %s299, %s297
          %s301 = smul.addr %s300, 4
          %s302 = scalar_lea.vmem %s2, %s301
        $region52: #{tpu_custom_call.1} parent=47 // pred_fallthru
          _
      $region48: #{tpu_custom_call.1} parent=5 // pred_fallthru
        _
    $region6: #{tpu_custom_call.1} parent=1 // loop_footer
      %s18 = sadd.s32 1, %s14
    $region7: #{tpu_custom_call.1} parent=1 // loop_footer_branch
      %13 = sbr.rel target = $region3
    $region8: #{tpu_custom_call.1} parent=1 // loop_exit
      _
    %303 = vsyncpa [#allocation3], 1
    %s304 = scalar_lea.sflag [#allocation3], 1
    %305 = vsyncpa %s304, 1
    %306 = vsyncpa [#allocation5], 1
    %s307 = scalar_lea.sflag [#allocation5], 1
    %308 = vsyncpa %s307, 1

</llo_original>
